<compile_context>
chip_gen: v7x
topology: tpu7x:2x2x1
jax: 0.10.0
libtpu: 0.0.40
codegen_flags: <defaults>
</compile_context>

<pallas_src>
import functools

import jax
import jax.numpy as jnp
from jax.experimental import pallas as pl
from jax.experimental.pallas import tpu as pltpu


def _prompt_mlp_kernel(emb_ref, w1_ref, b1_ref, w2_ref, b2_ref, out_ref):
    # emb: (L, H) bf16, w1: (H, P) bf16, b1: (1, P) f32,
    # w2: (P, tO) bf16, b2: (1, tO) f32, out: (L, tO)
    h = jnp.dot(emb_ref[...], w1_ref[...],
                preferred_element_type=jnp.float32) + b1_ref[...]
    h = jnp.tanh(h)
    # bf16 MXU inputs, f32 accumulation.  MXU has huge slack at L <= 64; the
    # relaxed (2e-2) parity vs the f32 reference comes from bf16 weight
    # rounding, which is accepted here (result is computed once and cached).
    o = jnp.dot(h.astype(w2_ref.dtype), w2_ref[...],
                preferred_element_type=jnp.float32) + b2_ref[...]
    out_ref[...] = o.astype(out_ref.dtype)


def _vmem_budget_bytes():
    """Per-generation scoped-VMEM budget for this kernel."""
    try:
        cap = int(getattr(pltpu.get_tpu_info(), "vmem_capacity_bytes", 64 << 20))
    except Exception:  # pragma: no cover - conservative fallback
        cap = 64 << 20
    if cap <= (64 << 20):
        # v7x-class: 64 MiB physical VMEM -> stay well inside the 32 MiB
        # default scoped limit and leave headroom for co-resident allocations.
        return 28 << 20
    # v5e / v6e: 128 MiB physical VMEM.
    return 64 << 20


def _choose_o_tile(O, L, H, P, in_bytes, out_bytes, budget, max_tile_o=None):
    """Pick the largest lane-dense (multiple-of-128) output tile whose
    double-buffered streamed footprint fits `budget`.

    Returns (tO, O_pad): O_pad > O means w2/b2 must be zero-padded and the
    output sliced back to O (masked last tile via padding).
    """
    headroom = 4 << 20
    resident = (L * H + H * P) * in_bytes + P * 4          # emb + w1 + b1
    per_lane = 2 * (P * in_bytes + 4 + L * out_bytes)      # 2x (w2 + b2 + out)
    avail = budget - headroom - resident
    cap = max(128, (avail // per_lane) // 128 * 128)
    if max_tile_o is not None:                              # test-time override
        cap = max(128, min(cap, (max_tile_o // 128) * 128))
    if O <= cap:
        return O, O                                         # single full block
    # Largest lane-dense divisor of O that fits.
    for t in range(cap, 127, -128):
        if O % t == 0:
            return t, O
    # No lane-dense divisor <= cap: pad O to a multiple of the cap tile.
    t = cap
    return t, pl.cdiv(O, t) * t


@functools.partial(jax.jit, static_argnames=("max_tile_o", "out_dtype"))
def prompt_mlp(emb, w1, b1, w2, b2, *, max_tile_o=None, out_dtype=jnp.float32):
    """trans(embedding.weight): (L, H) -> (L, num_blocks*2*hidden)."""
    L, H = emb.shape
    P = w1.shape[1]
    O = w2.shape[1]

    in_bytes = jnp.dtype(emb.dtype).itemsize
    out_bytes = jnp.dtype(out_dtype).itemsize

    b1 = b1.reshape(1, P).astype(jnp.float32)
    b2 = b2.reshape(1, O).astype(jnp.float32)

    budget = _vmem_budget_bytes()
    tO, O_pad = _choose_o_tile(O, L, H, P, in_bytes, out_bytes, budget, max_tile_o)
    if O_pad != O:
        w2 = jnp.pad(w2, ((0, 0), (0, O_pad - O)))
        b2 = jnp.pad(b2, ((0, 0), (0, O_pad - O)))
    n_steps = O_pad // tO

    # Resident blocks single-buffered + streamed blocks double-buffered + headroom.
    needed = ((L * H + H * P) * in_bytes + P * 4
              + 2 * (P * tO * in_bytes + tO * 4 + L * tO * out_bytes))
    vmem_bytes = int(min(max(needed + (4 << 20), 16 << 20), budget))

    cost = pl.CostEstimate(
        flops=2 * L * H * P * n_steps + 2 * L * P * O_pad,
        transcendentals=L * P * n_steps,
        bytes_accessed=((L * H + H * P) * in_bytes + (P + O_pad) * 4
                        + P * O_pad * in_bytes + L * O_pad * out_bytes),
    )

    out = pl.pallas_call(
        _prompt_mlp_kernel,
        out_shape=jax.ShapeDtypeStruct((L, O_pad), out_dtype),
        grid_spec=pl.GridSpec(
            grid=(n_steps,),
            in_specs=[
                pl.BlockSpec((L, H), lambda j: (0, 0)),    # emb (resident)
                pl.BlockSpec((H, P), lambda j: (0, 0)),    # w1  (resident)
                pl.BlockSpec((1, P), lambda j: (0, 0)),    # b1  (resident)
                pl.BlockSpec((P, tO), lambda j: (0, j)),   # w2  (streamed)
                pl.BlockSpec((1, tO), lambda j: (0, j)),   # b2  (streamed)
            ],
            out_specs=pl.BlockSpec((L, tO), lambda j: (0, j)),
        ),
        compiler_params=pltpu.CompilerParams(
            dimension_semantics=("parallel",),
            vmem_limit_bytes=vmem_bytes,
        ),
        cost_estimate=cost,
    )(emb, w1, b1, w2, b2)

    if O_pad != O:
        out = out[:, :O]
    return out


class PromptEncoderPallas:
    """JAX/Pallas re-implementation of the PyTorch PromptEncoder forward pass."""

    def __init__(
        self,
        prompt_projection=True,
        domain_prompt_size=8,
        prompt_hidden_size=64,
        domain_hidden_dropout_prob=0.1,
        num_blocks=2,
        attention_heads=4,
        hidden_size=32,
        compute_dtype=jnp.bfloat16,
        out_dtype=jnp.float32,
        max_tile_o=None,      # test-time override only; None => auto-size
        key=None,
    ):
        assert prompt_projection, "only prompt_projection=True path implemented"
        self.pre_seq_len = domain_prompt_size
        self.num_blocks = num_blocks
        self.n_head = attention_heads
        self.n_embd = hidden_size // attention_heads
        self.hidden_size = hidden_size
        self.compute_dtype = compute_dtype
        self.out_dtype = out_dtype
        self.max_tile_o = max_tile_o
        out_dim = num_blocks * 2 * hidden_size

        if key is None:
            key = jax.random.PRNGKey(0)
        k_emb, k_w1, k_b1, k_w2, k_b2 = jax.random.split(key, 5)

        # Canonical f32 parameters (shapes match the PyTorch module).
        self.embedding = jax.random.normal(
            k_emb, (self.pre_seq_len, hidden_size), jnp.float32
        ) * 0.02
        lim1 = 1.0 / (hidden_size ** 0.5)
        self.w1 = jax.random.uniform(
            k_w1, (hidden_size, prompt_hidden_size), jnp.float32, -lim1, lim1
        )
        self.b1 = jax.random.uniform(
            k_b1, (prompt_hidden_size,), jnp.float32, -lim1, lim1
        )
        lim2 = 1.0 / (prompt_hidden_size ** 0.5)
        self.w2 = jax.random.uniform(
            k_w2, (prompt_hidden_size, out_dim), jnp.float32, -lim2, lim2
        )
        self.b2 = jax.random.uniform(k_b2, (out_dim,), jnp.float32, -lim2, lim2)

        # One-time compute-dtype copies (no per-call casts in the hot path).
        self._emb_c = None
        self._w1_c = None
        self._w2_c = None
        # Cached xs-independent prompt tensor (nb*2, n_head, L, n_embd).
        self._pkv_cache = None
        self.invalidate_cache()

    def invalidate_cache(self):
        """Call after any weight update."""
        self._emb_c = self.embedding.astype(self.compute_dtype)
        self._w1_c = self.w1.astype(self.compute_dtype)
        self._w2_c = self.w2.astype(self.compute_dtype)
        self._pkv_cache = None

    def _prompt_kv(self):
        if self._pkv_cache is None:
            # prompt_tokens == arange(pre_seq_len) => the lookup is the full
            # embedding table; identical for every batch element, so the whole
            # MLP is batch-independent and computed exactly once.
            pkv_2d = prompt_mlp(
                self._emb_c, self._w1_c, self.b1, self._w2_c, self.b2,
                max_tile_o=self.max_tile_o, out_dtype=self.out_dtype,
            )  # (L, nb*2*H), lane-dense
            L = self.pre_seq_len
            nb2 = self.num_blocks * 2
            # Layout glue BEFORE the batch broadcast:
            # (L, nb*2, n_head, n_embd) -> (nb*2, n_head, L, n_embd)
            pkv = pkv_2d.reshape(L, nb2, self.n_head, self.n_embd)
            self._pkv_cache = jnp.transpose(pkv, (1, 2, 0, 3))
        return self._pkv_cache

    def forward(self, xs):
        batch_size = xs.shape[0]
        L = self.pre_seq_len
        nb2 = self.num_blocks * 2
        pkv = self._prompt_kv()
        # dropout == identity (eval mode)
        # Insert the batch axis as a pure broadcast: (nb*2, B, n_head, L, n_embd)
        pkv = jnp.broadcast_to(
            pkv[:, None], (nb2, batch_size, self.n_head, L, self.n_embd)
        )
        # split(2) along dim 0 -> tuple of num_blocks tensors (2, B, n_head, L, n_embd)
        return tuple(pkv[2 * i: 2 * i + 2] for i in range(self.num_blocks))


def _reference_forward(enc: PromptEncoderPallas, xs):
    """Pure-JAX f32 reference (mirrors the original PyTorch op order)."""
    batch_size = xs.shape[0]
    h = jnp.tanh(enc.embedding @ enc.w1 + enc.b1)
    o = h @ enc.w2 + enc.b2
    pkv = jnp.broadcast_to(o[None], (batch_size,) + o.shape)
    pkv = pkv.reshape(
        batch_size, enc.pre_seq_len, enc.num_blocks * 2, enc.n_head, enc.n_embd
    )
    pkv = jnp.transpose(pkv, (2, 0, 3, 1, 4))
    return tuple(pkv[2 * i: 2 * i + 2] for i in range(enc.num_blocks))


def _check(enc, batch):
    xs = jnp.zeros((batch, enc.pre_seq_len), dtype=jnp.int32)
    out = jax.block_until_ready(enc.forward(xs))
    # Second call with a different batch size exercises the cached path.
    xs2 = jnp.zeros((batch + 1, enc.pre_seq_len), dtype=jnp.int32)
    out2 = jax.block_until_ready(enc.forward(xs2))
    ref = _reference_forward(enc, xs)
    ref2 = _reference_forward(enc, xs2)
    for o, r, b in ((out, ref, batch), (out2, ref2, batch + 1)):
        for a, rr in zip(o, r):
            assert a.shape == (2, b, enc.n_head, enc.pre_seq_len, enc.n_embd), a.shape
            # bf16 MXU inputs with f32 accumulation -> relaxed tolerance vs f32 ref.
            assert jnp.allclose(a, rr, atol=2e-2, rtol=2e-2), float(
                jnp.max(jnp.abs(a - rr))
            )


if __name__ == "__main__":
    key = jax.random.PRNGKey(0)

    # Config 1: tiny (single O block, grid=(1,), auto tile size).
    enc_small = PromptEncoderPallas(
        prompt_projection=True,
        domain_prompt_size=8,     # prefix length
        prompt_hidden_size=64,
        num_blocks=2,
        attention_heads=4,
        hidden_size=32,
        key=key,
    )
    _check(enc_small, batch=2)

    # Config 2: larger out_dim with the O dimension actually tiled
    # (O = 4*2*128 = 1024, tile = 256 -> grid=(4,)).  max_tile_o is a
    # test-only override; production leaves it None (single block).
    enc_tiled = PromptEncoderPallas(
        prompt_projection=True,
        domain_prompt_size=16,
        prompt_hidden_size=128,
        num_blocks=4,
        attention_heads=4,
        hidden_size=128,
        max_tile_o=256,
        key=jax.random.PRNGKey(0),
    )
    _check(enc_tiled, batch=3)

    # Config 3: awkward O (192, not a multiple of the 128 tile) exercises the
    # zero-padded last-tile path (O_pad = 256, grid=(2,)).
    enc_padded = PromptEncoderPallas(
        prompt_projection=True,
        domain_prompt_size=8,
        prompt_hidden_size=64,
        num_blocks=3,
        attention_heads=4,
        hidden_size=32,
        max_tile_o=128,
        key=jax.random.PRNGKey(0),
    )
    _check(enc_padded, batch=2)

    # Config 4: the module's default sizes (O = 12*2*256 = 6144) with
    # auto tile selection under the per-generation VMEM budget.
    enc_default = PromptEncoderPallas(
        prompt_projection=True,
        domain_prompt_size=64,
        prompt_hidden_size=512,
        num_blocks=12,
        attention_heads=4,
        hidden_size=256,
        key=jax.random.PRNGKey(0),
    )
    _check(enc_default, batch=2)

    print("KERNEL_OK")
</pallas_src>

<mosaic_0001>
module attributes {stable_mosaic.version = 11 : i64} {
  func.func @_prompt_mlp_kernel(%arg0: i32, %arg1: memref<8x32xbf16, #tpu.memory_space<vmem>>, %arg2: memref<32x64xbf16, #tpu.memory_space<vmem>>, %arg3: memref<1x64xf32, #tpu.memory_space<vmem>>, %arg4: memref<64x128xbf16, #tpu.memory_space<vmem>>, %arg5: memref<1x128xf32, #tpu.memory_space<vmem>>, %arg6: memref<8x128xf32, #tpu.memory_space<vmem>>) attributes {dimension_semantics = [#tpu.dimension_semantics<parallel>], iteration_bounds = array<i64: 1>, scalar_prefetch = 0 : i64, scratch_operands = 0 : i64, tpu.core_type = #tpu.core_type<tc>, window_params = [{pipeline_mode = #tpu.pipeline_mode<synchronous>, transform_indices = @transform_0, window_bounds = array<i64: 8, 32>}, {pipeline_mode = #tpu.pipeline_mode<synchronous>, transform_indices = @transform_1, window_bounds = array<i64: 32, 64>}, {pipeline_mode = #tpu.pipeline_mode<synchronous>, transform_indices = @transform_2, window_bounds = array<i64: 1, 64>}, {transform_indices = @transform_3, window_bounds = array<i64: 64, 128>}, {transform_indices = @transform_4, window_bounds = array<i64: 1, 128>}, {transform_indices = @transform_5, window_bounds = array<i64: 8, 128>}]} {
    %c0 = arith.constant 0 : index
    %c0_0 = arith.constant 0 : index
    %0 = vector.load %arg1[%c0, %c0_0] : memref<8x32xbf16, #tpu.memory_space<vmem>>, vector<8x32xbf16>
    %c0_1 = arith.constant 0 : index
    %c0_2 = arith.constant 0 : index
    %1 = vector.load %arg2[%c0_1, %c0_2] : memref<32x64xbf16, #tpu.memory_space<vmem>>, vector<32x64xbf16>
    %cst = arith.constant dense<0.000000e+00> : vector<8x64xf32>
    %2 = tpu.matmul %0, %1, %cst {dimension_numbers = #tpu.dot_dimension_numbers<[1], [0], [0], [1], [0, 0, 1, 1], [], []>} : vector<8x32xbf16>, vector<32x64xbf16>, vector<8x64xf32> -> vector<8x64xf32>
    %c0_3 = arith.constant 0 : index
    %c0_4 = arith.constant 0 : index
    %3 = vector.load %arg3[%c0_3, %c0_4] : memref<1x64xf32, #tpu.memory_space<vmem>>, vector<1x64xf32>
    %4 = vector.broadcast %3 : vector<1x64xf32> to vector<8x64xf32>
    %5 = arith.addf %2, %4 : vector<8x64xf32>
    %6 = math.tanh %5 : vector<8x64xf32>
    %7 = arith.truncf %6 : vector<8x64xf32> to vector<8x64xbf16>
    %c0_5 = arith.constant 0 : index
    %c0_6 = arith.constant 0 : index
    %8 = vector.load %arg4[%c0_5, %c0_6] : memref<64x128xbf16, #tpu.memory_space<vmem>>, vector<64x128xbf16>
    %cst_7 = arith.constant dense<0.000000e+00> : vector<8x128xf32>
    %9 = tpu.matmul %7, %8, %cst_7 {dimension_numbers = #tpu.dot_dimension_numbers<[1], [0], [0], [1], [0, 0, 1, 1], [], []>} : vector<8x64xbf16>, vector<64x128xbf16>, vector<8x128xf32> -> vector<8x128xf32>
    %c0_8 = arith.constant 0 : index
    %c0_9 = arith.constant 0 : index
    %10 = vector.load %arg5[%c0_8, %c0_9] : memref<1x128xf32, #tpu.memory_space<vmem>>, vector<1x128xf32>
    %11 = vector.broadcast %10 : vector<1x128xf32> to vector<8x128xf32>
    %12 = arith.addf %9, %11 : vector<8x128xf32>
    %c0_10 = arith.constant 0 : index
    %c0_11 = arith.constant 0 : index
    %13 = vector.load %arg6[%c0_10, %c0_11] : memref<8x128xf32, #tpu.memory_space<vmem>>, vector<8x128xf32>
    tpu.vector_store %arg6[%c0_10, %c0_11], %12 {strides = array<i32>} : memref<8x128xf32, #tpu.memory_space<vmem>>, vector<8x128xf32>,
    return
  }
  func.func @transform_0(%arg0: i32) -> (i32, i32) {
    %c0_i32 = arith.constant 0 : i32
    %c0_i32_0 = arith.constant 0 : i32
    %c0_i32_1 = arith.constant 0 : i32
    return %c0_i32, %c0_i32_0 : i32, i32
  }
  func.func @transform_1(%arg0: i32) -> (i32, i32) {
    %c0_i32 = arith.constant 0 : i32
    %c0_i32_0 = arith.constant 0 : i32
    %c0_i32_1 = arith.constant 0 : i32
    return %c0_i32, %c0_i32_0 : i32, i32
  }
  func.func @transform_2(%arg0: i32) -> (i32, i32) {
    %c0_i32 = arith.constant 0 : i32
    %c0_i32_0 = arith.constant 0 : i32
    %c0_i32_1 = arith.constant 0 : i32
    return %c0_i32, %c0_i32_0 : i32, i32
  }
  func.func @transform_3(%arg0: i32) -> (i32, i32) {
    %c0_i32 = arith.constant 0 : i32
    %c0_i32_0 = arith.constant 0 : i32
    return %c0_i32, %arg0 : i32, i32
  }
  func.func @transform_4(%arg0: i32) -> (i32, i32) {
    %c0_i32 = arith.constant 0 : i32
    %c0_i32_0 = arith.constant 0 : i32
    return %c0_i32, %arg0 : i32, i32
  }
  func.func @transform_5(%arg0: i32) -> (i32, i32) {
    %c0_i32 = arith.constant 0 : i32
    %c0_i32_0 = arith.constant 0 : i32
    return %c0_i32, %arg0 : i32, i32
  }
}

</mosaic_0001>

<llo_original>
// kernel: prompt_mlp.1
$region0: #{prompt_mlp.1}
  #allocation0 [shape = 'u32[]', space=smem, size = 0x4, offset = 0x4, fixed_abs, tag = 'smem constant byte address 0x4 - core index']
  #allocation1 [shape = 'u32[144,128]{1,0:T(1,128)}', space=vmem, size = 0x12000, scoped, tag = 'internal scratch']
  %s0 = inlined_call_operand.vmem [shape: bf16[8,32], index: 0, kind: input, shape index: {}]
  %s1 = inlined_call_operand.hbm [shape: bf16[32,64], index: 1, kind: input, shape index: {}]
  %s2 = inlined_call_operand.vmem [shape: f32[1,64], index: 2, kind: input, shape index: {}]
  %s3 = inlined_call_operand.hbm [shape: bf16[64,128], index: 3, kind: input, shape index: {}]
  %s4 = inlined_call_operand.vmem [shape: f32[1,128], index: 4, kind: input, shape index: {}]
  %s5 = inlined_call_operand.hbm [shape: f32[8,128], index: 5, kind: output, shape index: {}]
  %s6 = sld [smem:[#allocation0]]
  $region38: #{prompt_mlp.1} parent=0
    _
  %s8 = ssub.s32 1, %s6
  %s9 = scalar_select 0, %s8, %s6
  $region1: #{prompt_mlp.1} parent=0
    #allocation2 [shape = 'u8[8192]{0}', space=vmem, size = 0x2000, scoped, tag = 'input window, operand 1, single buffered']
    #allocation3 [shape = 's32[1]{0}', space=sflag, size = 0x4, scoped, tag = 'scoped memory for prompt_mlp.1']
    #allocation4 [shape = 's32[1]{0}', space=sflag, size = 0x4, scoped, tag = 'scoped memory for prompt_mlp.1']
    #allocation5 [shape = 'u8[16384]{0}', space=vmem, size = 0x4000, scoped, tag = 'input window, operand 3, single buffered']
    #allocation6 [shape = 's32[1]{0}', space=sflag, size = 0x4, scoped, tag = 'scoped memory for prompt_mlp.1']
    #allocation7 [shape = 'u8[4096]{0}', space=vmem, size = 0x1000, scoped, tag = 'output window, operand 0, single buffered']
    %10 = vsyncpa [#allocation3], 0
    %11 = vsyncpa [#allocation6], 0
    %12 = vsyncpa [#allocation4], 0
    // Predicated region
    $region2: #{prompt_mlp.1} parent=1 // pred_check
      _
    $region3: #{prompt_mlp.1} parent=1 // pred_check_branch
      %14 = sbr.rel (0) target = $region5
    $region4: #{prompt_mlp.1} parent=1 // pred_region
      _
    $region5: #{prompt_mlp.1} parent=1 // pred_fallthru
      _
    // Predicated region
    $region6: #{prompt_mlp.1} parent=1 // pred_check
      _
    $region7: #{prompt_mlp.1} parent=1 // pred_check_branch
      %16 = sbr.rel (0) target = $region9
    $region8: #{prompt_mlp.1} parent=1 // pred_region
      %s18 = ssub.s32 256, 256
      %19 = vsyncadd [#allocation3], %s18
      %s20 = sshll.u32 [#allocation2], 4
      %s21 = int_to_ptr.vmem [resolvable:$true] %s20
      %26 = dma.hbm_to_vmem [thread:$0]  %s1, 256, %s21, [#allocation3], 64, 64, 4
    $region9: #{prompt_mlp.1} parent=1 // pred_fallthru
      _
    // Predicated region
    $region10: #{prompt_mlp.1} parent=1 // pred_check
      _
    $region11: #{prompt_mlp.1} parent=1 // pred_check_branch
      %28 = sbr.rel (0) target = $region13
    $region12: #{prompt_mlp.1} parent=1 // pred_region
      _
    $region13: #{prompt_mlp.1} parent=1 // pred_fallthru
      _
    // Predicated region
    $region14: #{prompt_mlp.1} parent=1 // pred_check
      _
    $region15: #{prompt_mlp.1} parent=1 // pred_check_branch
      %30 = sbr.rel (0) target = $region17
    $region16: #{prompt_mlp.1} parent=1 // pred_region
      %s32 = ssub.s32 512, 512
      %33 = vsyncadd [#allocation6], %s32
      %s34 = sshll.u32 [#allocation5], 4
      %s35 = int_to_ptr.vmem [resolvable:$true] %s34
      %40 = dma.hbm_to_vmem [thread:$0]  %s3, 512, %s35, [#allocation6], 64, 64, 4
    $region17: #{prompt_mlp.1} parent=1 // pred_fallthru
      _
    // Predicated region
    $region18: #{prompt_mlp.1} parent=1 // pred_check
      _
    $region19: #{prompt_mlp.1} parent=1 // pred_check_branch
      %42 = sbr.rel (0) target = $region21
    $region20: #{prompt_mlp.1} parent=1 // pred_region
      _
    $region21: #{prompt_mlp.1} parent=1 // pred_fallthru
      _
    // Predicated region
    $region22: #{prompt_mlp.1} parent=1 // pred_check
      _
    $region23: #{prompt_mlp.1} parent=1 // pred_check_branch
      %44 = sbr.rel (0) target = $region25
    $region24: #{prompt_mlp.1} parent=1 // pred_region
      %45 = dma.done [#allocation3], 256
    $region25: #{prompt_mlp.1} parent=1 // pred_fallthru
      _
    // Predicated region
    $region26: #{prompt_mlp.1} parent=1 // pred_check
      _
    $region27: #{prompt_mlp.1} parent=1 // pred_check_branch
      %47 = sbr.rel (0) target = $region29
    $region28: #{prompt_mlp.1} parent=1 // pred_region
      %48 = dma.done [#allocation6], 512
    $region29: #{prompt_mlp.1} parent=1 // pred_fallthru
      _
    %v50 = vld [vmem:[%s0] sm:$0xf]
    %v51 = vld [vmem:[#allocation2] sm:$0xf]
    %v52 = vld [vmem:[#allocation2 + $0x4] sm:$0xf]
    %v53 = vld [vmem:[#allocation2 + $0x8] sm:$0xf]
    %v54 = vld [vmem:[#allocation2 + $0xc] sm:$0xf]
    %v55 = vld [vmem:[%s2] sm:$0x1]
    %v57 = vlaneseq
    %v58 = vshrl.u32 %v57, 7
    %v59 = vsub.s32 0, %v58
    %v60 = vrot.slane %v55, %v59
    %v66 = vunpack.c.l.b16 %v51
    %v67 = vunpack.c.l.b16 %v52
    %v68 = vunpack.c.l.b16 %v53
    %v69 = vunpack.c.l.b16 %v54
    %v70 = vpack.c.b16 %v67, %v66
    %v71 = vpack.c.b16 %v69, %v68
    %vm74 = vcmask 261120
    %v76 = vsel %vm74, %v50, 0
    %78 = vmatprep.subr.bf16.mxu0 0
    %79 = vmatpush1.bf16.msra.mxu0 %v70
    %80 = vmatprep.subr.bf16.mxu0 0
    %81 = vmatpush1.bf16.msra.mxu0 %v71
    %82 = vmatprep.subr.bf16.mxu0 0
    %83 = vmatpush1.bf16.msra.mxu0 0
    %84 = vmatprep.subr.bf16.mxu0 0
    %85 = vmatpush1.bf16.msra.mxu0 0
    %86 = vmatprep.subr.bf16.mxu0 0
    %87 = vmatpush1.bf16.msra.mxu0 0
    %88 = vmatprep.subr.bf16.mxu0 0
    %89 = vmatpush1.bf16.msra.mxu0 0
    %90 = vmatprep.subr.bf16.mxu0 0
    %91 = vmatpush1.bf16.msra.mxu0 0
    %92 = vmatprep.subr.bf16.mxu0 0
    %93 = vmatpush1.bf16.msra.mxu0 0
    %94 = vmatprep.subr.bf16.mxu0 0
    %95 = vmatpush1.bf16.msra.mxu0 0
    %96 = vmatprep.subr.bf16.mxu0 0
    %97 = vmatpush1.bf16.msra.mxu0 0
    %98 = vmatprep.subr.bf16.mxu0 0
    %99 = vmatpush1.bf16.msra.mxu0 0
    %100 = vmatprep.subr.bf16.mxu0 0
    %101 = vmatpush1.bf16.msra.mxu0 0
    %102 = vmatprep.subr.bf16.mxu0 0
    %103 = vmatpush1.bf16.msra.mxu0 0
    %104 = vmatprep.subr.bf16.mxu0 0
    %105 = vmatpush1.bf16.msra.mxu0 0
    %106 = vmatprep.subr.bf16.mxu0 0
    %107 = vmatpush1.bf16.msra.mxu0 0
    %108 = vmatprep.subr.bf16.mxu0 0
    %109 = vmatpush1.bf16.msra.mxu0 0
    %110 = vmatprep.mubr.bf16.mxu0 0
    %111 = vmatmul.mubr.bf16.gmra.mrb[0].mxu0 %v76
    %v112 = vpop.f32.mrb[0].mxu0
    %v113 = vadd.f32 %v60, %v112
    %v114 = vpop.f32.mrb[0].mxu0
    %v115 = vpop.f32.mrb[0].mxu0
    %v116 = vpop.f32.mrb[0].mxu0
    %117 = vdwg.mxu0
    %v118 = vtanh.pop %v113
    %v119 = vpack.c.bf16 %v118, %v118
    %v120 = vld [vmem:[#allocation5] sm:$0xf]
    %v121 = vld [vmem:[#allocation5 + $0x4] sm:$0xf]
    %v122 = vld [vmem:[#allocation5 + $0x8] sm:$0xf]
    %v123 = vld [vmem:[#allocation5 + $0xc] sm:$0xf]
    %v124 = vld [vmem:[#allocation5 + $0x10] sm:$0xf]
    %v125 = vld [vmem:[#allocation5 + $0x14] sm:$0xf]
    %v126 = vld [vmem:[#allocation5 + $0x18] sm:$0xf]
    %v127 = vld [vmem:[#allocation5 + $0x1c] sm:$0xf]
    %v128 = vld [vmem:[%s4] sm:$0x1]
    %v130 = vlaneseq
    %v131 = vshrl.u32 %v130, 7
    %v132 = vsub.s32 0, %v131
    %v133 = vrot.slane %v128, %v132
    %v143 = vunpack.c.l.b16 %v120
    %v144 = vunpack.c.l.b16 %v121
    %v145 = vunpack.c.l.b16 %v122
    %v146 = vunpack.c.l.b16 %v123
    %v147 = vunpack.c.l.b16 %v124
    %v148 = vunpack.c.l.b16 %v125
    %v149 = vunpack.c.l.b16 %v126
    %v150 = vunpack.c.l.b16 %v127
    %v151 = vpack.c.b16 %v144, %v143
    %v152 = vpack.c.b16 %v146, %v145
    %v153 = vpack.c.b16 %v148, %v147
    %v154 = vpack.c.b16 %v150, %v149
    %vm159 = vcmask 523264
    %v161 = vsel %vm159, %v119, 0
    %163 = vmatprep.subr.bf16.mxu0 0
    %164 = vmatpush1.bf16.msra.mxu0 %v151
    %165 = vmatprep.subr.bf16.mxu0 0
    %166 = vmatpush1.bf16.msra.mxu0 %v152
    %167 = vmatprep.subr.bf16.mxu0 0
    %168 = vmatpush1.bf16.msra.mxu0 %v153
    %169 = vmatprep.subr.bf16.mxu0 0
    %170 = vmatpush1.bf16.msra.mxu0 %v154
    %171 = vmatprep.subr.bf16.mxu0 0
    %172 = vmatpush1.bf16.msra.mxu0 0
    %173 = vmatprep.subr.bf16.mxu0 0
    %174 = vmatpush1.bf16.msra.mxu0 0
    %175 = vmatprep.subr.bf16.mxu0 0
    %176 = vmatpush1.bf16.msra.mxu0 0
    %177 = vmatprep.subr.bf16.mxu0 0
    %178 = vmatpush1.bf16.msra.mxu0 0
    %179 = vmatprep.subr.bf16.mxu0 0
    %180 = vmatpush1.bf16.msra.mxu0 0
    %181 = vmatprep.subr.bf16.mxu0 0
    %182 = vmatpush1.bf16.msra.mxu0 0
    %183 = vmatprep.subr.bf16.mxu0 0
    %184 = vmatpush1.bf16.msra.mxu0 0
    %185 = vmatprep.subr.bf16.mxu0 0
    %186 = vmatpush1.bf16.msra.mxu0 0
    %187 = vmatprep.subr.bf16.mxu0 0
    %188 = vmatpush1.bf16.msra.mxu0 0
    %189 = vmatprep.subr.bf16.mxu0 0
    %190 = vmatpush1.bf16.msra.mxu0 0
    %191 = vmatprep.subr.bf16.mxu0 0
    %192 = vmatpush1.bf16.msra.mxu0 0
    %193 = vmatprep.subr.bf16.mxu0 0
    %194 = vmatpush1.bf16.msra.mxu0 0
    %195 = vmatprep.mubr.bf16.mxu0 0
    %196 = vmatmul.mubr.bf16.gmra.mrb[0].mxu0 %v161
    %v197 = vpop.f32.mrb[0].mxu0
    %v198 = vadd.f32 %v133, %v197
    %v199 = vpop.f32.mrb[0].mxu0
    %v200 = vpop.f32.mrb[0].mxu0
    %v201 = vpop.f32.mrb[0].mxu0
    %202 = vdwg.mxu0
    %203 = vst [vmem:[#allocation7] sm:$0xff] %v198
    // Predicated region
    $region30: #{prompt_mlp.1} parent=1 // pred_check
      _
    $region31: #{prompt_mlp.1} parent=1 // pred_check_branch
      %205 = sbr.rel (0) target = $region33
    $region32: #{prompt_mlp.1} parent=1 // pred_region
      %s207 = ssub.s32 128, 128
      %208 = vsyncadd [#allocation4], %s207
      %s210 = sshll.u32 [#allocation7], 4
      %s211 = int_to_ptr.vmem [resolvable:$true] %s210
      %213 = dma.vmem_to_hbm [thread:$0]  %s211, 128, %s5, [#allocation4]
    $region33: #{prompt_mlp.1} parent=1 // pred_fallthru
      _
    // Predicated region
    $region34: #{prompt_mlp.1} parent=1 // pred_check
      _
    $region35: #{prompt_mlp.1} parent=1 // pred_check_branch
      %215 = sbr.rel (0) target = $region37
    $region36: #{prompt_mlp.1} parent=1 // pred_region
      %216 = dma.done [#allocation4], 128
    $region37: #{prompt_mlp.1} parent=1 // pred_fallthru
      _
    %217 = vsyncpa [#allocation3], 1
    %218 = vsyncpa [#allocation6], 1
    %219 = vsyncpa [#allocation4], 1

</llo_original>
